<compile_context>
chip_gen: v7x
topology: tpu7x:2x2x1
jax: 0.10.0
libtpu: 0.0.40
codegen_flags: <defaults>
</compile_context>

<pallas_src>
import functools

import jax
import jax.numpy as jnp
from jax.experimental import pallas as pl
from jax.experimental.pallas import tpu as pltpu


def _custom_act_kernel(x_ref, o_ref, *, compute_dtype):
    x = x_ref[...].astype(compute_dtype)
    # sigmoid(x) = 0.5 * tanh(x/2) + 0.5  -> single EUP transcendental,
    # mul/add/max on the VPU; all hidden under the streaming DMA.
    sig = 0.5 * jnp.tanh(0.5 * x) + 0.5
    o_ref[...] = (jnp.maximum(x, 0.0) * sig).astype(o_ref.dtype)


def _cdiv(a: int, b: int) -> int:
    return -(-a // b)


def _round_up(a: int, b: int) -> int:
    return _cdiv(a, b) * b


def _device_info():
    """(is_v7x, num_tensorcores_per_device, bf16_native_vpu_eup)."""
    kind = ""
    try:
        kind = (jax.devices()[0].device_kind or "").lower()
    except Exception:
        pass
    is_v7 = "v7" in kind
    # Megacore / dual-TC parts: v7x, v4, v5p.  v5e/v6e are single-TC.
    num_tc = 2 if (is_v7 or "v4" in kind or "v5p" in kind) else 1
    # v5e has no bf16 VPU/EUP; keep f32 compute there.
    native_bf16 = is_v7 or ("v6" in kind)
    return is_v7, num_tc, native_bf16


def custom_activation(
    x: jax.Array,
    *,
    block_bytes: int | None = None,     # None -> per-generation default
    min_pallas_elems: int = 64 * 1024,
) -> jax.Array:
    """relu(x) * sigmoid(x), computed in a Pallas TPU kernel (elementwise)."""
    orig_shape = x.shape
    orig_dtype = x.dtype
    n = x.size

    # Small / awkward sizes: launch + pipeline prologue dwarfs the work, and
    # skipping Pallas here also avoids any padding copies.
    if n < max(min_pallas_elems, 128) or n % 128 != 0:
        return (jnp.maximum(x, 0) * jax.nn.sigmoid(x)).astype(orig_dtype)

    is_v7, num_tc, native_bf16 = _device_info()

    # Per-generation block budget; scoped VMEM derived from it so callers
    # can't push live VMEM past the limit (v7x: 64 MiB physical VMEM).
    max_block = (8 << 20) if is_v7 else (16 << 20)
    if block_bytes is None:
        block_bytes = max_block
    block_bytes = max(64 * 1024, min(int(block_bytes), max_block))
    # double-buffered in + out ~= 4x block, plus headroom for internal scratch.
    vmem_limit = max(32 << 20, 4 * block_bytes + (16 << 20))

    # bf16-native compute on v6e/v7x; f32 upcast elsewhere (v5e, f16, ...).
    compute_dtype = (
        jnp.bfloat16 if (orig_dtype == jnp.bfloat16 and native_bf16) else jnp.float32
    )

    itemsize = jnp.dtype(orig_dtype).itemsize
    sub = max(8, 32 // itemsize)     # sublane multiple: 8 (f32), 16 (bf16), 32 (8-bit)

    # Lane-dense last dim; anything >= 128 is already unmasked-vst / contiguous
    # DMA, so keep the choice trivial.
    lanes = 128
    for cand in (1024, 512, 256):
        if n % cand == 0:
            lanes = cand
            break
    rows = n // lanes
    row_bytes = lanes * itemsize

    # Rows per block from the byte budget (sublane-aligned).
    tr_budget = max(sub, (block_bytes // row_bytes) // sub * sub)

    if tr_budget >= rows:
        if num_tc >= 2 and rows >= num_tc * sub:
            # Split into num_tc near-equal blocks so both TensorCores get work.
            tr = _round_up(_cdiv(rows, num_tc), sub)
        else:
            # Single-TC chip (or tiny input): one full-extent block, no split.
            tr = rows
    else:
        steps = _cdiv(rows, tr_budget)
        if num_tc >= 2:
            # Balance the grid across TensorCores: step count a multiple of
            # num_tc with near-equal block sizes (avoid a lone tiny edge block
            # landing on one TC).
            steps = _round_up(steps, num_tc)
        tr = max(sub, _round_up(_cdiv(rows, steps), sub))

    x2d = jnp.reshape(x, (rows, lanes))   # metadata-only reshape, no copy

    kernel = functools.partial(_custom_act_kernel, compute_dtype=compute_dtype)

    out2d = pl.pallas_call(
        kernel,
        out_shape=jax.ShapeDtypeStruct((rows, lanes), orig_dtype),
        grid_spec=pltpu.PrefetchScalarGridSpec(
            num_scalar_prefetch=0,
            grid=(pl.cdiv(rows, tr),),    # partial edge block masked by Pallas
            in_specs=[pl.BlockSpec((tr, lanes), lambda i: (i, 0))],
            out_specs=pl.BlockSpec((tr, lanes), lambda i: (i, 0)),
        ),
        compiler_params=pltpu.CompilerParams(
            # "parallel" lets Mosaic shard the row axis over both TCs on
            # megacore parts (v7x / v4 / v5p); no-op on single-TC chips.
            dimension_semantics=("parallel",),
            vmem_limit_bytes=vmem_limit,
        ),
    )(x2d)

    return jnp.reshape(out2d, orig_shape)


if __name__ == "__main__":
    key = jax.random.PRNGKey(0)
    k1, k2 = jax.random.split(key)

    # Small NCHW input consistent with the PyTorch module: (B=2, C=4, H=16, W=16).
    x_small = jax.random.normal(k1, (2, 4, 16, 16), dtype=jnp.float32)
    ref_small = jnp.maximum(x_small, 0.0) * jax.nn.sigmoid(x_small)

    # 1) Default wrapper path (small-input fast path, XLA fallback).
    out_default = jax.block_until_ready(custom_activation(x_small))
    assert out_default.shape == x_small.shape and out_default.dtype == x_small.dtype
    assert jnp.allclose(out_default, ref_small, atol=1e-5, rtol=1e-5)

    # 2) Force the Pallas kernel on the same small input (single full block).
    #    Tolerance is 1e-5 because the kernel uses the tanh-based sigmoid
    #    (identical math, last-ulp differences vs jax.nn.sigmoid).
    out_pallas = jax.block_until_ready(
        custom_activation(x_small, min_pallas_elems=0)
    )
    assert out_pallas.shape == x_small.shape and out_pallas.dtype == x_small.dtype
    assert jnp.allclose(out_pallas, ref_small, atol=1e-5, rtol=1e-5)

    # 3) Slightly larger input exercising the multi-step grid, TC-balanced step
    #    rounding, and the masked partial edge block (small block_bytes just to
    #    force >1 grid step; real workloads use the per-generation default).
    x_med = jax.random.normal(k2, (8, 8, 24, 40), dtype=jnp.float32)
    out_med = jax.block_until_ready(
        custom_activation(x_med, min_pallas_elems=0, block_bytes=128 * 1024)
    )
    ref_med = jnp.maximum(x_med, 0.0) * jax.nn.sigmoid(x_med)
    assert out_med.shape == x_med.shape and out_med.dtype == x_med.dtype
    assert jnp.allclose(out_med, ref_med, atol=1e-5, rtol=1e-5)

    print("KERNEL_OK")
</pallas_src>

<mosaic_0001>
module attributes {stable_mosaic.version = 11 : i64} {
  func.func @_custom_act_kernel(%arg0: i32, %arg1: memref<2x1024xf32, #tpu.memory_space<vmem>>, %arg2: memref<2x1024xf32, #tpu.memory_space<vmem>>) attributes {dimension_semantics = [#tpu.dimension_semantics<parallel>], iteration_bounds = array<i64: 1>, scalar_prefetch = 0 : i64, scratch_operands = 0 : i64, tpu.core_type = #tpu.core_type<tc>, window_params = [{transform_indices = @transform_0, window_bounds = array<i64: 2, 1024>}, {transform_indices = @transform_1, window_bounds = array<i64: 2, 1024>}]} {
    %c0 = arith.constant 0 : index
    %c0_0 = arith.constant 0 : index
    %0 = vector.load %arg1[%c0, %c0_0] : memref<2x1024xf32, #tpu.memory_space<vmem>>, vector<2x1024xf32>
    %cst = arith.constant 5.000000e-01 : f32
    %1 = vector.broadcast %cst : f32 to vector<2x1024xf32>
    %2 = arith.mulf %1, %0 : vector<2x1024xf32>
    %3 = math.tanh %2 : vector<2x1024xf32>
    %cst_1 = arith.constant 5.000000e-01 : f32
    %4 = vector.broadcast %cst_1 : f32 to vector<2x1024xf32>
    %5 = arith.mulf %4, %3 : vector<2x1024xf32>
    %cst_2 = arith.constant 5.000000e-01 : f32
    %6 = vector.broadcast %cst_2 : f32 to vector<2x1024xf32>
    %7 = arith.addf %5, %6 : vector<2x1024xf32>
    %cst_3 = arith.constant 0.000000e+00 : f32
    %8 = vector.broadcast %cst_3 : f32 to vector<2x1024xf32>
    %9 = arith.maximumf %0, %8 : vector<2x1024xf32>
    %10 = arith.mulf %9, %7 : vector<2x1024xf32>
    %c0_4 = arith.constant 0 : index
    %c0_5 = arith.constant 0 : index
    %11 = vector.load %arg2[%c0_4, %c0_5] : memref<2x1024xf32, #tpu.memory_space<vmem>>, vector<2x1024xf32>
    tpu.vector_store %arg2[%c0_4, %c0_5], %10 {strides = array<i32>} : memref<2x1024xf32, #tpu.memory_space<vmem>>, vector<2x1024xf32>,
    return
  }
  func.func @transform_0(%arg0: i32) -> (i32, i32) {
    %c0_i32 = arith.constant 0 : i32
    %c0_i32_0 = arith.constant 0 : i32
    return %arg0, %c0_i32 : i32, i32
  }
  func.func @transform_1(%arg0: i32) -> (i32, i32) {
    %c0_i32 = arith.constant 0 : i32
    %c0_i32_0 = arith.constant 0 : i32
    return %arg0, %c0_i32 : i32, i32
  }
}

</mosaic_0001>

<llo_original>
// kernel: tpu_custom_call.1
$region0: #{tpu_custom_call.1}
  #allocation0 [shape = 'u32[]', space=smem, size = 0x4, offset = 0x4, fixed_abs, tag = 'smem constant byte address 0x4 - core index']
  #allocation1 [shape = 'u32[144,128]{1,0:T(1,128)}', space=vmem, size = 0x12000, scoped, tag = 'internal scratch']
  %s0 = inlined_call_operand.hbm [shape: f32[2,1024], index: 0, kind: input, shape index: {}]
  %s1 = inlined_call_operand.hbm [shape: f32[2,1024], index: 1, kind: output, shape index: {}]
  %s2 = sld [smem:[#allocation0]]
  $region18: #{tpu_custom_call.1} parent=0
    _
  %s4 = ssub.s32 1, %s2
  %s5 = scalar_select 0, %s4, %s2
  $region1: #{tpu_custom_call.1} parent=0
    #allocation2 [shape = 'u8[8192]{0}', space=vmem, size = 0x2000, scoped, tag = 'input window, operand 0, single buffered']
    #allocation3 [shape = 's32[1]{0}', space=sflag, size = 0x4, scoped, tag = 'scoped memory for tpu_custom_call.1']
    #allocation4 [shape = 's32[1]{0}', space=sflag, size = 0x4, scoped, tag = 'scoped memory for tpu_custom_call.1']
    #allocation5 [shape = 'u8[8192]{0}', space=vmem, size = 0x2000, scoped, tag = 'output window, operand 0, single buffered']
    %6 = vsyncpa [#allocation3], 0
    %7 = vsyncpa [#allocation4], 0
    // Predicated region
    $region2: #{tpu_custom_call.1} parent=1 // pred_check
      _
    $region3: #{tpu_custom_call.1} parent=1 // pred_check_branch
      %9 = sbr.rel (0) target = $region5
    $region4: #{tpu_custom_call.1} parent=1 // pred_region
      %s11 = ssub.s32 256, 256
      %12 = vsyncadd [#allocation3], %s11
      %s14 = sshll.u32 [#allocation2], 4
      %s15 = int_to_ptr.vmem [resolvable:$true] %s14
      %17 = dma.hbm_to_vmem [thread:$0]  %s0, 256, %s15, [#allocation3]
    $region5: #{tpu_custom_call.1} parent=1 // pred_fallthru
      _
    // Predicated region
    $region6: #{tpu_custom_call.1} parent=1 // pred_check
      _
    $region7: #{tpu_custom_call.1} parent=1 // pred_check_branch
      %19 = sbr.rel (0) target = $region9
    $region8: #{tpu_custom_call.1} parent=1 // pred_region
      %20 = dma.done [#allocation3], 256
    $region9: #{tpu_custom_call.1} parent=1 // pred_fallthru
      _
    %v21 = vld [vmem:[#allocation2] sm:$0xff]
    %v22 = vld [vmem:[#allocation2 + $0x8] sm:$0xff]
    %v23 = vmul.f32 %v21, 0.5
    %v24 = vmul.f32 %v22, 0.5
    %v25 = vtanh.pop %v23
    %v26 = vtanh.pop %v24
    %v27 = vmul.f32 %v25, 0.5
    %v28 = vmul.f32 %v26, 0.5
    %v29 = vadd.f32 %v27, 0.5
    %v30 = vadd.f32 %v28, 0.5
    %v31 = vmax.f32 %v21, 0.0
    %v32 = vmax.f32 %v22, 0.0
    %v33 = vmul.f32 %v31, %v29
    %v34 = vmul.f32 %v32, %v30
    %35 = vst [vmem:[#allocation5] sm:$0xff] %v33
    %36 = vst [vmem:[#allocation5 + $0x8] sm:$0xff] %v34
    // Predicated region
    $region10: #{tpu_custom_call.1} parent=1 // pred_check
      _
    $region11: #{tpu_custom_call.1} parent=1 // pred_check_branch
      %38 = sbr.rel (0) target = $region13
    $region12: #{tpu_custom_call.1} parent=1 // pred_region
      %s40 = ssub.s32 256, 256
      %41 = vsyncadd [#allocation4], %s40
      %s43 = sshll.u32 [#allocation5], 4
      %s44 = int_to_ptr.vmem [resolvable:$true] %s43
      %46 = dma.vmem_to_hbm [thread:$0]  %s44, 256, %s1, [#allocation4]
    $region13: #{tpu_custom_call.1} parent=1 // pred_fallthru
      _
    // Predicated region
    $region14: #{tpu_custom_call.1} parent=1 // pred_check
      _
    $region15: #{tpu_custom_call.1} parent=1 // pred_check_branch
      %48 = sbr.rel (0) target = $region17
    $region16: #{tpu_custom_call.1} parent=1 // pred_region
      %49 = dma.done [#allocation4], 256
    $region17: #{tpu_custom_call.1} parent=1 // pred_fallthru
      _
    %50 = vsyncpa [#allocation3], 1
    %51 = vsyncpa [#allocation4], 1

</llo_original>
